<compile_context>
chip_gen: v7x
topology: tpu7x:2x2x1
jax: 0.10.0
libtpu: 0.0.40
codegen_flags: <defaults>
</compile_context>

<pallas_src>
import functools

import jax
import jax.numpy as jnp
from jax import lax
from jax.experimental import pallas as pl
from jax.experimental.pallas import tpu as pltpu

_MIB = 1024 * 1024


# --------------------------- hardware sizing --------------------------------


def _tpu_vmem_capacity_bytes():
    """Physical VMEM per TensorCore; conservative 64 MiB fallback (v7x)."""
    try:
        cap = int(pltpu.get_tpu_info().vmem_capacity_bytes)
        if cap > 0:
            return cap
    except Exception:
        pass
    return 64 * _MIB


def _num_tensorcores():
    """Best-effort TensorCore count of the local device (1 on v5e/v6e, 2 on v7x)."""
    try:
        dev = jax.devices()[0]
        n = getattr(dev, "num_cores", None)
        if n:
            return int(n)
        kind = str(getattr(dev, "device_kind", "")).lower()
        if "7" in kind:
            return 2
    except Exception:
        pass
    return 1


def _vmem_limits():
    """(vmem_limit_bytes for CompilerParams, live-buffer budget)."""
    cap = _tpu_vmem_capacity_bytes()
    vmem_limit = (3 * cap) // 4           # ~96 MiB on v5e/v6e, ~48 MiB on v7x
    budget = max(8 * _MIB, vmem_limit - 4 * _MIB)
    return vmem_limit, budget


def _choose_k_tile(k, per_col_bytes, fixed_bytes, budget_bytes):
    """Largest lane-aligned K tile whose live buffers fit the VMEM budget.

    per_col_bytes: bytes of pipelined (double-buffered) feature buffers per K column
    fixed_bytes:   bytes resident for the whole kernel (accumulator/target/output)
    """
    k_aligned = max(128, pl.cdiv(k, 128) * 128)
    avail = max(0, budget_bytes - fixed_bytes)
    tk_max = avail // max(per_col_bytes, 1)
    tk_max = max(128, (tk_max // 128) * 128)
    return min(k_aligned, tk_max)


# --------------------------- feature plumbing --------------------------------


def _flatten_features(x, compute_dtype):
    """NCHW -> (N*C, H*W) in compute_dtype (no padding yet)."""
    a, b, c, d = x.shape
    m, k = a * b, c * d
    feats = x.reshape(m, k)
    if feats.dtype != compute_dtype:
        feats = feats.astype(compute_dtype)
    return feats, m, k


def _pad_k(feats, tk):
    """Zero-pad K to a multiple of tk (exact for a gram matrix)."""
    m, k = feats.shape
    k_pad = pl.cdiv(k, tk) * tk
    if k_pad != k:
        feats = jnp.pad(feats, ((0, 0), (0, k_pad - k)))
    return feats, k_pad


def _compute_dtype(x, use_bf16):
    return jnp.bfloat16 if (use_bf16 or x.dtype == jnp.bfloat16) else jnp.float32


# ------------------------------- kernels -------------------------------------


def _gram_kernel_single(feat_ref, gram_ref, *, inv_norm):
    # feat_ref: (m, tk) K chunk of F (single, de-duplicated input)
    # gram_ref: (m, m)  f32 output block, resident across the K axis (accumulator)
    k = pl.program_id(0)

    @pl.when(k == 0)
    def _():
        gram_ref[...] = jnp.zeros_like(gram_ref)

    f = feat_ref[...]
    # Contract dim 1 of both operands: G += F_chunk @ F_chunk^T without
    # materializing the transpose.
    gram_ref[...] += lax.dot_general(
        f, f,
        dimension_numbers=(((1,), (1,)), ((), ())),
        preferred_element_type=jnp.float32,
    )

    @pl.when(k == pl.num_programs(0) - 1)
    def _():
        gram_ref[...] *= inv_norm


def _gram_kernel_rows(rows_ref, full_ref, gram_ref, *, inv_norm):
    # Multi-TensorCore (v7x) variant: leading "parallel" row axis.
    # rows_ref: (tm, tk) row block of F     full_ref: (m, tk) all rows of F
    # gram_ref: (tm, m)  f32 output block (accumulator across K)
    k = pl.program_id(1)

    @pl.when(k == 0)
    def _():
        gram_ref[...] = jnp.zeros_like(gram_ref)

    gram_ref[...] += lax.dot_general(
        rows_ref[...], full_ref[...],
        dimension_numbers=(((1,), (1,)), ((), ())),
        preferred_element_type=jnp.float32,
    )

    @pl.when(k == pl.num_programs(1) - 1)
    def _():
        gram_ref[...] *= inv_norm


def _style_loss_kernel(feat_ref, tgt_hbm, loss_ref, acc_ref, tgt_vmem, tgt_sem, *,
                       inv_norm, inv_msq):
    # feat_ref: (m, tk) K chunk of the flattened input features
    # tgt_hbm : (m, m)  target gram, raw HBM ref (memory_space=pl.ANY)
    # loss_ref: (1, 1)  SMEM scalar MSE loss
    # acc_ref : (m, m)  f32 VMEM accumulator (un-normalized input gram)
    # tgt_vmem: (m, m)  f32 single-buffered VMEM copy of the target
    k = pl.program_id(0)

    @pl.when(k == 0)
    def _():
        acc_ref[...] = jnp.zeros_like(acc_ref)
        # One-shot target prefetch: single VMEM buffer, overlapped with the
        # whole K reduction (no per-step re-buffering).
        pltpu.make_async_copy(tgt_hbm, tgt_vmem, tgt_sem).start()

    f = feat_ref[...]
    acc_ref[...] += lax.dot_general(
        f, f,
        dimension_numbers=(((1,), (1,)), ((), ())),
        preferred_element_type=jnp.float32,
    )

    @pl.when(k == pl.num_programs(0) - 1)
    def _():
        pltpu.make_async_copy(tgt_hbm, tgt_vmem, tgt_sem).wait()
        diff = acc_ref[...] * inv_norm - tgt_vmem[...]
        loss_ref[0, 0] = jnp.sum(diff * diff) * inv_msq


# ------------------------------- wrappers -------------------------------------


def gram_matrix(x, *, use_bf16=False):
    """Pallas gram matrix: x is NCHW; returns (N*C, N*C) float32."""
    a, b, c, d = x.shape
    dtype = _compute_dtype(x, use_bf16)
    dt_bytes = jnp.dtype(dtype).itemsize
    feats, m, k = _flatten_features(x, dtype)
    inv_norm = 1.0 / float(a * b * c * d)
    vmem_limit, budget = _vmem_limits()

    # Split rows only on multi-TC chips (v7x); on single-TC v5e/v6e it just
    # multiplies HBM reads with zero compute benefit.
    if _num_tensorcores() > 1 and m >= 512 and (m % 16 == 0):
        tm = m // 2
    else:
        tm = m
    rows = m // tm

    out_bytes = 2 * tm * m * 4                      # (possibly double-buffered) f32 output block
    if rows == 1:
        per_col = 2 * m * dt_bytes                  # one de-duplicated, double-buffered input
    else:
        per_col = 2 * (tm + m) * dt_bytes           # row block + full block, double-buffered
    tk = _choose_k_tile(k, per_col, out_bytes, budget)
    feats, k_pad = _pad_k(feats, tk)
    kt = k_pad // tk

    if rows == 1:
        kernel = functools.partial(_gram_kernel_single, inv_norm=inv_norm)
        return pl.pallas_call(
            kernel,
            out_shape=jax.ShapeDtypeStruct((m, m), jnp.float32),
            grid_spec=pltpu.PrefetchScalarGridSpec(
                num_scalar_prefetch=0,
                grid=(kt,),
                in_specs=[pl.BlockSpec((m, tk), lambda kk: (0, kk))],
                out_specs=pl.BlockSpec((m, m), lambda kk: (0, 0)),
            ),
            compiler_params=pltpu.CompilerParams(
                dimension_semantics=("arbitrary",),
                vmem_limit_bytes=vmem_limit),
        )(feats)

    kernel = functools.partial(_gram_kernel_rows, inv_norm=inv_norm)
    return pl.pallas_call(
        kernel,
        out_shape=jax.ShapeDtypeStruct((m, m), jnp.float32),
        grid_spec=pltpu.PrefetchScalarGridSpec(
            num_scalar_prefetch=0,
            grid=(rows, kt),
            in_specs=[
                pl.BlockSpec((tm, tk), lambda i, kk: (i, kk)),
                pl.BlockSpec((m, tk), lambda i, kk: (0, kk)),
            ],
            out_specs=pl.BlockSpec((tm, m), lambda i, kk: (i, 0)),
        ),
        compiler_params=pltpu.CompilerParams(
            dimension_semantics=("parallel", "arbitrary"),
            vmem_limit_bytes=vmem_limit),
    )(feats, feats)


def style_loss_forward(x, target_gram, *, use_bf16=False):
    """Returns (input_passthrough, mse_loss_scalar). Gram of x stays in VMEM only."""
    a, b, c, d = x.shape
    dtype = _compute_dtype(x, use_bf16)
    dt_bytes = jnp.dtype(dtype).itemsize
    feats, m, k = _flatten_features(x, dtype)
    inv_norm = 1.0 / float(a * b * c * d)
    inv_msq = 1.0 / float(m * m)
    vmem_limit, budget = _vmem_limits()

    if target_gram.dtype != jnp.float32:
        target_gram = target_gram.astype(jnp.float32)

    # Resident: f32 accumulator (m,m) + single-buffered target copy (m,m).
    # NOTE: for very large m (resident buffers alone > budget) a column-tiled
    # variant would be needed; typical style-transfer M = N*C stays small.
    fixed = 2 * m * m * 4
    per_col = 2 * m * dt_bytes                      # double-buffered (m, tk) feature chunks
    tk = _choose_k_tile(k, per_col, fixed, budget)
    feats, k_pad = _pad_k(feats, tk)
    kt = k_pad // tk

    kernel = functools.partial(_style_loss_kernel, inv_norm=inv_norm, inv_msq=inv_msq)
    loss = pl.pallas_call(
        kernel,
        out_shape=jax.ShapeDtypeStruct((1, 1), jnp.float32),
        grid_spec=pltpu.PrefetchScalarGridSpec(
            num_scalar_prefetch=0,
            grid=(kt,),
            in_specs=[
                pl.BlockSpec((m, tk), lambda kk: (0, kk)),
                pl.BlockSpec(memory_space=pl.ANY),       # target: manual one-shot DMA
            ],
            out_specs=pl.BlockSpec(memory_space=pltpu.SMEM),
            scratch_shapes=[
                pltpu.VMEM((m, m), jnp.float32),          # un-normalized gram accumulator
                pltpu.VMEM((m, m), jnp.float32),          # single-buffered target copy
                pltpu.SemaphoreType.DMA(()),
            ],
        ),
        compiler_params=pltpu.CompilerParams(
            dimension_semantics=("arbitrary",),
            vmem_limit_bytes=vmem_limit),
    )(feats, target_gram)

    # forward() returns the input unchanged (loss is a side attribute in torch)
    return x, loss[0, 0]


class StyleLoss:
    """JAX/Pallas port of the PyTorch StyleLoss module."""

    def __init__(self, target_feature, *, use_bf16=False):
        # target gram is "detached" — just a constant array here
        self.use_bf16 = use_bf16
        self.target = gram_matrix(target_feature, use_bf16=use_bf16)
        self.loss = None

    def __call__(self, x):
        out, loss = style_loss_forward(x, self.target, use_bf16=self.use_bf16)
        self.loss = loss
        return out


# ------------------------------ main ---------------------------------------

if __name__ == "__main__":
    key = jax.random.PRNGKey(0)
    k_tgt, k_in = jax.random.split(key)

    # small NCHW conv-feature shapes (M = N*C = 8, K = H*W = 256)
    N, C, H, W = 2, 4, 16, 16
    target_feature = jax.random.normal(k_tgt, (N, C, H, W), dtype=jnp.float32)
    x = jax.random.normal(k_in, (N, C, H, W), dtype=jnp.float32)

    module = StyleLoss(target_feature)
    out = module(x)

    out = jax.block_until_ready(out)
    loss = jax.block_until_ready(module.loss)

    # sanity: forward is a passthrough, loss is a finite scalar
    assert out.shape == x.shape
    assert bool(jnp.allclose(out, x))
    assert bool(jnp.isfinite(loss))

    # cross-check against a pure-JAX reference
    def ref_gram(v):
        a, b, c, d = v.shape
        f = v.reshape(a * b, c * d)
        return (f @ f.T) / (a * b * c * d)

    ref_loss = jnp.mean((ref_gram(x) - ref_gram(target_feature)) ** 2)
    assert bool(jnp.allclose(module.target, ref_gram(target_feature),
                             rtol=1e-5, atol=1e-6))
    assert bool(jnp.allclose(loss, ref_loss, rtol=1e-5, atol=1e-6))

    print("KERNEL_OK")
</pallas_src>

<mosaic_0001>
module attributes {stable_mosaic.version = 11 : i64} {
  func.func @_gram_kernel_single(%arg0: i32, %arg1: memref<8x256xf32, #tpu.memory_space<vmem>>, %arg2: memref<8x8xf32, #tpu.memory_space<vmem>>) attributes {dimension_semantics = [#tpu.dimension_semantics<arbitrary>], iteration_bounds = array<i64: 1>, scalar_prefetch = 0 : i64, scratch_operands = 0 : i64, tpu.core_type = #tpu.core_type<tc>, window_params = [{transform_indices = @transform_0, window_bounds = array<i64: 8, 256>}, {pipeline_mode = #tpu.pipeline_mode<synchronous>, transform_indices = @transform_1, window_bounds = array<i64: 8, 8>}]} {
    %c0_i32 = arith.constant 0 : i32
    %0 = arith.cmpi eq, %arg0, %c0_i32 : i32
    %1 = arith.extui %0 : i1 to i32
    %c0_i32_0 = arith.constant 0 : i32
    %2 = arith.cmpi ne, %1, %c0_i32_0 : i32
    scf.if %2 {
      %cst_8 = arith.constant 0.000000e+00 : f32
      %11 = vector.broadcast %cst_8 : f32 to vector<8x8xf32>
      %c0_9 = arith.constant 0 : index
      %c0_10 = arith.constant 0 : index
      %12 = vector.load %arg2[%c0_9, %c0_10] : memref<8x8xf32, #tpu.memory_space<vmem>>, vector<8x8xf32>
      tpu.vector_store %arg2[%c0_9, %c0_10], %11 {strides = array<i32>} : memref<8x8xf32, #tpu.memory_space<vmem>>, vector<8x8xf32>,
    } else {
    }
    %c0 = arith.constant 0 : index
    %c0_1 = arith.constant 0 : index
    %3 = vector.load %arg1[%c0, %c0_1] : memref<8x256xf32, #tpu.memory_space<vmem>>, vector<8x256xf32>
    %c0_2 = arith.constant 0 : index
    %c0_3 = arith.constant 0 : index
    %4 = vector.load %arg2[%c0_2, %c0_3] : memref<8x8xf32, #tpu.memory_space<vmem>>, vector<8x8xf32>
    %cst = arith.constant dense<0.000000e+00> : vector<8x8xf32>
    %5 = tpu.matmul %3, %3, %cst {dimension_numbers = #tpu.dot_dimension_numbers<[1], [1], [0], [0], [0, 0, 1, 0], [], []>} : vector<8x256xf32>, vector<8x256xf32>, vector<8x8xf32> -> vector<8x8xf32>
    %6 = arith.addf %4, %5 : vector<8x8xf32>
    %c0_4 = arith.constant 0 : index
    %c0_5 = arith.constant 0 : index
    %7 = vector.load %arg2[%c0_4, %c0_5] : memref<8x8xf32, #tpu.memory_space<vmem>>, vector<8x8xf32>
    tpu.vector_store %arg2[%c0_4, %c0_5], %6 {strides = array<i32>} : memref<8x8xf32, #tpu.memory_space<vmem>>, vector<8x8xf32>,
    %c0_i32_6 = arith.constant 0 : i32
    %8 = arith.cmpi eq, %arg0, %c0_i32_6 : i32
    %9 = arith.extui %8 : i1 to i32
    %c0_i32_7 = arith.constant 0 : i32
    %10 = arith.cmpi ne, %9, %c0_i32_7 : i32
    scf.if %10 {
      %c0_8 = arith.constant 0 : index
      %c0_9 = arith.constant 0 : index
      %11 = vector.load %arg2[%c0_8, %c0_9] : memref<8x8xf32, #tpu.memory_space<vmem>>, vector<8x8xf32>
      %cst_10 = arith.constant 4.8828125E-4 : f32
      %12 = vector.broadcast %cst_10 : f32 to vector<8x8xf32>
      %13 = arith.mulf %11, %12 : vector<8x8xf32>
      %c0_11 = arith.constant 0 : index
      %c0_12 = arith.constant 0 : index
      %14 = vector.load %arg2[%c0_11, %c0_12] : memref<8x8xf32, #tpu.memory_space<vmem>>, vector<8x8xf32>
      tpu.vector_store %arg2[%c0_11, %c0_12], %13 {strides = array<i32>} : memref<8x8xf32, #tpu.memory_space<vmem>>, vector<8x8xf32>,
    } else {
    }
    return
  }
  func.func @transform_0(%arg0: i32) -> (i32, i32) {
    %c0_i32 = arith.constant 0 : i32
    %c0_i32_0 = arith.constant 0 : i32
    return %c0_i32, %arg0 : i32, i32
  }
  func.func @transform_1(%arg0: i32) -> (i32, i32) {
    %c0_i32 = arith.constant 0 : i32
    %c0_i32_0 = arith.constant 0 : i32
    %c0_i32_1 = arith.constant 0 : i32
    return %c0_i32, %c0_i32_0 : i32, i32
  }
}

</mosaic_0001>

<llo_original>
// kernel: tpu_custom_call.1
$region0: #{tpu_custom_call.1}
  #allocation0 [shape = 'u32[]', space=smem, size = 0x4, offset = 0x4, fixed_abs, tag = 'smem constant byte address 0x4 - core index']
  #allocation1 [shape = 'u32[144,128]{1,0:T(1,128)}', space=vmem, size = 0x12000, scoped, tag = 'internal scratch']
  %s0 = inlined_call_operand.hbm [shape: f32[8,256], index: 0, kind: input, shape index: {}]
  %s1 = inlined_call_operand.hbm [shape: f32[8,8], index: 1, kind: output, shape index: {}]
  %s2 = sld [smem:[#allocation0]]
  $region26: #{tpu_custom_call.1} parent=0
    _
  %s4 = ssub.s32 1, %s2
  %s5 = scalar_select 0, %s4, %s2
  $region1: #{tpu_custom_call.1} parent=0
    #allocation2 [shape = 'u8[8192]{0}', space=vmem, size = 0x2000, scoped, tag = 'input window, operand 0, single buffered']
    #allocation3 [shape = 's32[1]{0}', space=sflag, size = 0x4, scoped, tag = 'scoped memory for tpu_custom_call.1']
    #allocation4 [shape = 's32[1]{0}', space=sflag, size = 0x4, scoped, tag = 'scoped memory for tpu_custom_call.1']
    #allocation5 [shape = 'u8[4096]{0}', space=vmem, size = 0x1000, scoped, tag = 'output window, operand 0, single buffered']
    %6 = vsyncpa [#allocation3], 0
    %7 = vsyncpa [#allocation4], 0
    // Predicated region
    $region2: #{tpu_custom_call.1} parent=1 // pred_check
      _
    $region3: #{tpu_custom_call.1} parent=1 // pred_check_branch
      %9 = sbr.rel (0) target = $region5
    $region4: #{tpu_custom_call.1} parent=1 // pred_region
      %s11 = ssub.s32 256, 256
      %12 = vsyncadd [#allocation3], %s11
      %s14 = sshll.u32 [#allocation2], 4
      %s15 = int_to_ptr.vmem [resolvable:$true] %s14
      %17 = dma.hbm_to_vmem [thread:$0]  %s0, 256, %s15, [#allocation3]
    $region5: #{tpu_custom_call.1} parent=1 // pred_fallthru
      _
    // Predicated region
    $region6: #{tpu_custom_call.1} parent=1 // pred_check
      _
    $region7: #{tpu_custom_call.1} parent=1 // pred_check_branch
      %19 = sbr.rel (0) target = $region9
    $region8: #{tpu_custom_call.1} parent=1 // pred_region
      %20 = dma.done [#allocation3], 256
    $region9: #{tpu_custom_call.1} parent=1 // pred_fallthru
      _
    %p21 = scmp.eq.s32.totalorder 0, 0
    // Predicated region
    $region10: #{tpu_custom_call.1} parent=1 // pred_check
      %p22 = pneg %p21
    $region11: #{tpu_custom_call.1} parent=1 // pred_check_branch
      %24 = sbr.rel (%p22) target = $region13
    $region12: #{tpu_custom_call.1} parent=1 // pred_region
      %vm25 = vcmask 64512
      %26 = vst.msk [vmem:[#allocation5] sm:$0xff] %vm25, 0.0
    $region13: #{tpu_custom_call.1} parent=1 // pred_fallthru
      _
    %v27 = vld [vmem:[#allocation2] sm:$0xff]
    %v28 = vld [vmem:[#allocation2 + $0x8] sm:$0xff]
    %v29 = vld [vmem:[#allocation5] sm:$0xff]
    %30 = vmatprep.subr.mxu0 %v28
    %31 = vmatpush1.xpose.msra.mxu0 %v27
    %32 = vmatprep.subr.mxu0 0.0
    %33 = vmatpush1.xpose.msra.mxu0 0.0
    %34 = vmatprep.subr.mxu0 0.0
    %35 = vmatpush1.xpose.msra.mxu0 0.0
    %36 = vmatprep.subr.mxu0 0.0
    %37 = vmatpush1.xpose.msra.mxu0 0.0
    %38 = vmatprep.subr.mxu0 0.0
    %39 = vmatpush1.xpose.msra.mxu0 0.0
    %40 = vmatprep.subr.mxu0 0.0
    %41 = vmatpush1.xpose.msra.mxu0 0.0
    %42 = vmatprep.subr.mxu0 0.0
    %43 = vmatpush1.xpose.msra.mxu0 0.0
    %44 = vmatprep.subr.mxu0 0.0
    %45 = vmatpush1.xpose.msra.mxu0 0.0
    %46 = vmatprep.subr.mxu0 0.0
    %47 = vmatpush1.xpose.msra.mxu0 0.0
    %48 = vmatprep.subr.mxu0 0.0
    %49 = vmatpush1.xpose.msra.mxu0 0.0
    %50 = vmatprep.subr.mxu0 0.0
    %51 = vmatpush1.xpose.msra.mxu0 0.0
    %52 = vmatprep.subr.mxu0 0.0
    %53 = vmatpush1.xpose.msra.mxu0 0.0
    %54 = vmatprep.subr.mxu0 0.0
    %55 = vmatpush1.xpose.msra.mxu0 0.0
    %56 = vmatprep.subr.mxu0 0.0
    %57 = vmatpush1.xpose.msra.mxu0 0.0
    %58 = vmatprep.subr.mxu0 0.0
    %59 = vmatpush1.xpose.msra.mxu0 0.0
    %60 = vmatprep.subr.mxu0 0.0
    %61 = vmatpush1.xpose.msra.mxu0 0.0
    %62 = vmatprep.subr.mxu0 0.0
    %63 = vmatpush1.xpose.msra.mxu0 0.0
    %64 = vmatprep.subr.mxu0 0.0
    %65 = vmatpush1.xpose.msra.mxu0 0.0
    %66 = vmatprep.subr.mxu0 0.0
    %67 = vmatpush1.xpose.msra.mxu0 0.0
    %68 = vmatprep.subr.mxu0 0.0
    %69 = vmatpush1.xpose.msra.mxu0 0.0
    %70 = vmatprep.subr.mxu0 0.0
    %71 = vmatpush1.xpose.msra.mxu0 0.0
    %72 = vmatprep.subr.mxu0 0.0
    %73 = vmatpush1.xpose.msra.mxu0 0.0
    %74 = vmatprep.subr.mxu0 0.0
    %75 = vmatpush1.xpose.msra.mxu0 0.0
    %76 = vmatprep.subr.mxu0 0.0
    %77 = vmatpush1.xpose.msra.mxu0 0.0
    %78 = vmatprep.subr.mxu0 0.0
    %79 = vmatpush1.xpose.msra.mxu0 0.0
    %80 = vmatprep.subr.mxu0 0.0
    %81 = vmatpush1.xpose.msra.mxu0 0.0
    %82 = vmatprep.subr.mxu0 0.0
    %83 = vmatpush1.xpose.msra.mxu0 0.0
    %84 = vmatprep.subr.mxu0 0.0
    %85 = vmatpush1.xpose.msra.mxu0 0.0
    %86 = vmatprep.subr.mxu0 0.0
    %87 = vmatpush1.xpose.msra.mxu0 0.0
    %88 = vmatprep.subr.mxu0 0.0
    %89 = vmatpush1.xpose.msra.mxu0 0.0
    %90 = vmatprep.subr.mxu0 0.0
    %91 = vmatpush1.xpose.msra.mxu0 0.0
    %92 = vmatprep.subr.mxu0 0.0
    %93 = vmatpush1.xpose.msra.mxu0 0.0
    %94 = vmatprep.mubr.f32.mxu0 %v28
    %95 = vmatmul.mubr.f32.gmra.mrb[0].mxu0 %v27
    %v96 = vpop.f32.mrb[0].mxu0
    %v97 = vadd.f32 0.0, %v96
    %v98 = vpop.f32.mrb[0].mxu0
    %99 = vdwg.mxu0
    %v100 = vadd.f32 %v29, %v97
    %vm101 = vcmask 64512
    %102 = vst.msk [vmem:[#allocation5] sm:$0xff] %vm101, %v100
    // Predicated region
    $region14: #{tpu_custom_call.1} parent=1 // pred_check
      %p103 = pneg %p21
    $region15: #{tpu_custom_call.1} parent=1 // pred_check_branch
      %105 = sbr.rel (%p103) target = $region17
    $region16: #{tpu_custom_call.1} parent=1 // pred_region
      %v106 = vld [vmem:[#allocation5] sm:$0xff]
      %v107 = vmul.f32 %v106, 0.00048828125
      %108 = vst.msk [vmem:[#allocation5] sm:$0xff] %vm101, %v107
    $region17: #{tpu_custom_call.1} parent=1 // pred_fallthru
      _
    // Predicated region
    $region18: #{tpu_custom_call.1} parent=1 // pred_check
      _
    $region19: #{tpu_custom_call.1} parent=1 // pred_check_branch
      %110 = sbr.rel (0) target = $region21
    $region20: #{tpu_custom_call.1} parent=1 // pred_region
      %s112 = ssub.s32 128, 128
      %113 = vsyncadd [#allocation4], %s112
      %s115 = sshll.u32 [#allocation5], 4
      %s116 = int_to_ptr.vmem [resolvable:$true] %s115
      %118 = dma.vmem_to_hbm [thread:$0]  %s116, 128, %s1, [#allocation4]
    $region21: #{tpu_custom_call.1} parent=1 // pred_fallthru
      _
    // Predicated region
    $region22: #{tpu_custom_call.1} parent=1 // pred_check
      _
    $region23: #{tpu_custom_call.1} parent=1 // pred_check_branch
      %120 = sbr.rel (0) target = $region25
    $region24: #{tpu_custom_call.1} parent=1 // pred_region
      %121 = dma.done [#allocation4], 128
    $region25: #{tpu_custom_call.1} parent=1 // pred_fallthru
      _
    %122 = vsyncpa [#allocation3], 1
    %123 = vsyncpa [#allocation4], 1

</llo_original>
